<compile_context>
chip_gen: v6e
topology: v6e:2x2x1
jax: 0.10.0
libtpu: 0.0.40
codegen_flags: <defaults>
</compile_context>

<pallas_src>
import jax
import jax.numpy as jnp
from jax.experimental import pallas as pl
from jax.experimental.pallas import tpu as pltpu


def _deepset_kernel(x_ref,
                    pw1, pb1, pw2, pb2, pw3, pb3,
                    rw1, rb1, rw2, rb2, rw3, rb3,
                    o_ref):
    # x_ref: (TB*E, S) in VMEM; o_ref: (TB, latent). All shapes static.
    tb = o_ref.shape[0]
    e = x_ref.shape[0] // tb

    # phi on all set elements of this batch tile at once: three large matmuls.
    h = jnp.dot(x_ref[...], pw1[...], preferred_element_type=jnp.float32) + pb1[...]
    h = jnp.maximum(h, 0.0)
    h = jnp.dot(h, pw2[...], preferred_element_type=jnp.float32) + pb2[...]
    h = jnp.maximum(h, 0.0)
    h = jnp.dot(h, pw3[...], preferred_element_type=jnp.float32) + pb3[...]  # (TB*E, 16)

    # Sum-pool over the set (element) axis.
    pooled = jnp.sum(h.reshape(tb, e, h.shape[-1]), axis=1)  # (TB, 16)

    # rho on the pooled representation.
    r = jnp.dot(pooled, rw1[...], preferred_element_type=jnp.float32) + rb1[...]
    r = jnp.maximum(r, 0.0)
    r = jnp.dot(r, rw2[...], preferred_element_type=jnp.float32) + rb2[...]
    r = jnp.maximum(r, 0.0)
    r = jnp.dot(r, rw3[...], preferred_element_type=jnp.float32) + rb3[...]

    o_ref[...] = r.astype(o_ref.dtype)


def _choose_batch_tile(batch, max_tile=1024):
    """Largest batch tile <= max_tile that divides B with 8-row alignment."""
    if batch <= max_tile:
        return batch
    tb = (max_tile // 8) * 8
    while tb >= 8:
        if batch % tb == 0:
            return tb
        tb -= 8
    return batch  # fallback: single block


def deepset_forward(x, params, state_dim, latent_dim):
    """x: (B, E*state_dim) float32 -> (B, latent_dim) float32."""
    B, total = x.shape
    E = total // state_dim

    # Row-major reshape is free (no HBM copy): row b*E + i == element i of batch b.
    x_flat = x.reshape(B * E, state_dim)

    (pw1, pb1, pw2, pb2, pw3, pb3,
     rw1, rb1, rw2, rb2, rw3, rb3) = params
    weight_args = (pw1, pb1, pw2, pb2, pw3, pb3, rw1, rb1, rw2, rb2, rw3, rb3)

    TB = _choose_batch_tile(B)
    grid = (B // TB,)

    def resident(arr):
        # Same block for every grid step -> stays in VMEM, no re-fetch.
        return pl.BlockSpec(arr.shape, lambda i: (0, 0))

    return pl.pallas_call(
        _deepset_kernel,
        out_shape=jax.ShapeDtypeStruct((B, latent_dim), jnp.float32),
        grid_spec=pltpu.PrefetchScalarGridSpec(
            num_scalar_prefetch=0,
            grid=grid,
            in_specs=[pl.BlockSpec((TB * E, state_dim), lambda i: (i, 0))]
                     + [resident(a) for a in weight_args],
            out_specs=pl.BlockSpec((TB, latent_dim), lambda i: (i, 0)),
        ),
        compiler_params=pltpu.CompilerParams(
            dimension_semantics=("parallel",),
            vmem_limit_bytes=32 * 1024 * 1024,
        ),
    )(x_flat, *weight_args)


def init_params(key, state_dim, latent_dim):
    """Deterministic synthetic params. Weights stored (in, out), biases (1, out)."""
    dims_phi = [(state_dim, 64), (64, 64), (64, 16)]
    dims_rho = [(16, 64), (64, 64), (64, latent_dim)]
    params = []
    for (din, dout) in dims_phi + dims_rho:
        key, kw, kb = jax.random.split(key, 3)
        w = 0.1 * jax.random.normal(kw, (din, dout), dtype=jnp.float32)
        b = 0.1 * jax.random.normal(kb, (1, dout), dtype=jnp.float32)
        params.extend([w, b])
    return tuple(params)


def deepset_reference(x, params, state_dim):
    """Plain-JAX reference mirroring the PyTorch forward."""
    (pw1, pb1, pw2, pb2, pw3, pb3,
     rw1, rb1, rw2, rb2, rw3, rb3) = params
    B, total = x.shape
    E = total // state_dim

    def phi(z):
        h = jnp.maximum(z @ pw1 + pb1, 0.0)
        h = jnp.maximum(h @ pw2 + pb2, 0.0)
        return h @ pw3 + pb3

    X = jnp.zeros((B, 16), jnp.float32)
    for i in range(E):
        X = X + phi(x[:, i * state_dim:(i + 1) * state_dim])

    r = jnp.maximum(X @ rw1 + rb1, 0.0)
    r = jnp.maximum(r @ rw2 + rb2, 0.0)
    return r @ rw3 + rb3


if __name__ == "__main__":
    state_dim = 4      # phi input dim
    latent_dim = 8     # rho output dim
    num_elements = 8   # set size

    params = init_params(jax.random.PRNGKey(0), state_dim, latent_dim)

    # Small test (matches the module's typical tiny shapes): single grid step.
    key = jax.random.PRNGKey(0)
    key, kx = jax.random.split(key)
    x_small = jax.random.normal(kx, (2, num_elements * state_dim), dtype=jnp.float32)
    out_small = jax.block_until_ready(
        deepset_forward(x_small, params, state_dim, latent_dim))
    ref_small = deepset_reference(x_small, params, state_dim)
    assert out_small.shape == (2, latent_dim)
    assert jnp.allclose(out_small, ref_small, atol=1e-4, rtol=1e-4), "small mismatch"

    # Larger batch to exercise the batch grid / pipelined path (grid = 2).
    key, kx2 = jax.random.split(key)
    x_big = jax.random.normal(kx2, (2048, num_elements * state_dim), dtype=jnp.float32)
    out_big = jax.block_until_ready(
        deepset_forward(x_big, params, state_dim, latent_dim))
    ref_big = deepset_reference(x_big, params, state_dim)
    assert out_big.shape == (2048, latent_dim)
    assert jnp.allclose(out_big, ref_big, atol=1e-4, rtol=1e-4), "big mismatch"

    print("KERNEL_OK")
</pallas_src>

<mosaic_0001>
module attributes {stable_mosaic.version = 11 : i64} {
  func.func @_deepset_kernel(%arg0: i32, %arg1: memref<16x4xf32, #tpu.memory_space<vmem>>, %arg2: memref<4x64xf32, #tpu.memory_space<vmem>>, %arg3: memref<1x64xf32, #tpu.memory_space<vmem>>, %arg4: memref<64x64xf32, #tpu.memory_space<vmem>>, %arg5: memref<1x64xf32, #tpu.memory_space<vmem>>, %arg6: memref<64x16xf32, #tpu.memory_space<vmem>>, %arg7: memref<1x16xf32, #tpu.memory_space<vmem>>, %arg8: memref<16x64xf32, #tpu.memory_space<vmem>>, %arg9: memref<1x64xf32, #tpu.memory_space<vmem>>, %arg10: memref<64x64xf32, #tpu.memory_space<vmem>>, %arg11: memref<1x64xf32, #tpu.memory_space<vmem>>, %arg12: memref<64x8xf32, #tpu.memory_space<vmem>>, %arg13: memref<1x8xf32, #tpu.memory_space<vmem>>, %arg14: memref<2x8xf32, #tpu.memory_space<vmem>>) attributes {dimension_semantics = [#tpu.dimension_semantics<parallel>], iteration_bounds = array<i64: 1>, scalar_prefetch = 0 : i64, scratch_operands = 0 : i64, tpu.core_type = #tpu.core_type<tc>, window_params = [{transform_indices = @transform_0, window_bounds = array<i64: 16, 4>}, {pipeline_mode = #tpu.pipeline_mode<synchronous>, transform_indices = @transform_1, window_bounds = array<i64: 4, 64>}, {pipeline_mode = #tpu.pipeline_mode<synchronous>, transform_indices = @transform_2, window_bounds = array<i64: 1, 64>}, {pipeline_mode = #tpu.pipeline_mode<synchronous>, transform_indices = @transform_3, window_bounds = array<i64: 64, 64>}, {pipeline_mode = #tpu.pipeline_mode<synchronous>, transform_indices = @transform_4, window_bounds = array<i64: 1, 64>}, {pipeline_mode = #tpu.pipeline_mode<synchronous>, transform_indices = @transform_5, window_bounds = array<i64: 64, 16>}, {pipeline_mode = #tpu.pipeline_mode<synchronous>, transform_indices = @transform_6, window_bounds = array<i64: 1, 16>}, {pipeline_mode = #tpu.pipeline_mode<synchronous>, transform_indices = @transform_7, window_bounds = array<i64: 16, 64>}, {pipeline_mode = #tpu.pipeline_mode<synchronous>, transform_indices = @transform_8, window_bounds = array<i64: 1, 64>}, {pipeline_mode = #tpu.pipeline_mode<synchronous>, transform_indices = @transform_9, window_bounds = array<i64: 64, 64>}, {pipeline_mode = #tpu.pipeline_mode<synchronous>, transform_indices = @transform_10, window_bounds = array<i64: 1, 64>}, {pipeline_mode = #tpu.pipeline_mode<synchronous>, transform_indices = @transform_11, window_bounds = array<i64: 64, 8>}, {pipeline_mode = #tpu.pipeline_mode<synchronous>, transform_indices = @transform_12, window_bounds = array<i64: 1, 8>}, {transform_indices = @transform_13, window_bounds = array<i64: 2, 8>}]} {
    %c0 = arith.constant 0 : index
    %c0_0 = arith.constant 0 : index
    %0 = vector.load %arg1[%c0, %c0_0] : memref<16x4xf32, #tpu.memory_space<vmem>>, vector<16x4xf32>
    %c0_1 = arith.constant 0 : index
    %c0_2 = arith.constant 0 : index
    %1 = vector.load %arg2[%c0_1, %c0_2] : memref<4x64xf32, #tpu.memory_space<vmem>>, vector<4x64xf32>
    %cst = arith.constant dense<0.000000e+00> : vector<16x64xf32>
    %2 = tpu.matmul %0, %1, %cst {dimension_numbers = #tpu.dot_dimension_numbers<[1], [0], [0], [1], [0, 0, 1, 1], [], []>} : vector<16x4xf32>, vector<4x64xf32>, vector<16x64xf32> -> vector<16x64xf32>
    %c0_3 = arith.constant 0 : index
    %c0_4 = arith.constant 0 : index
    %3 = vector.load %arg3[%c0_3, %c0_4] : memref<1x64xf32, #tpu.memory_space<vmem>>, vector<1x64xf32>
    %4 = vector.broadcast %3 : vector<1x64xf32> to vector<16x64xf32>
    %5 = arith.addf %2, %4 : vector<16x64xf32>
    %cst_5 = arith.constant 0.000000e+00 : f32
    %6 = vector.broadcast %cst_5 : f32 to vector<16x64xf32>
    %7 = arith.maximumf %5, %6 : vector<16x64xf32>
    %c0_6 = arith.constant 0 : index
    %c0_7 = arith.constant 0 : index
    %8 = vector.load %arg4[%c0_6, %c0_7] : memref<64x64xf32, #tpu.memory_space<vmem>>, vector<64x64xf32>
    %cst_8 = arith.constant dense<0.000000e+00> : vector<16x64xf32>
    %9 = tpu.matmul %7, %8, %cst_8 {dimension_numbers = #tpu.dot_dimension_numbers<[1], [0], [0], [1], [0, 0, 1, 1], [], []>} : vector<16x64xf32>, vector<64x64xf32>, vector<16x64xf32> -> vector<16x64xf32>
    %c0_9 = arith.constant 0 : index
    %c0_10 = arith.constant 0 : index
    %10 = vector.load %arg5[%c0_9, %c0_10] : memref<1x64xf32, #tpu.memory_space<vmem>>, vector<1x64xf32>
    %11 = vector.broadcast %10 : vector<1x64xf32> to vector<16x64xf32>
    %12 = arith.addf %9, %11 : vector<16x64xf32>
    %cst_11 = arith.constant 0.000000e+00 : f32
    %13 = vector.broadcast %cst_11 : f32 to vector<16x64xf32>
    %14 = arith.maximumf %12, %13 : vector<16x64xf32>
    %c0_12 = arith.constant 0 : index
    %c0_13 = arith.constant 0 : index
    %15 = vector.load %arg6[%c0_12, %c0_13] : memref<64x16xf32, #tpu.memory_space<vmem>>, vector<64x16xf32>
    %cst_14 = arith.constant dense<0.000000e+00> : vector<16x16xf32>
    %16 = tpu.matmul %14, %15, %cst_14 {dimension_numbers = #tpu.dot_dimension_numbers<[1], [0], [0], [1], [0, 0, 1, 1], [], []>} : vector<16x64xf32>, vector<64x16xf32>, vector<16x16xf32> -> vector<16x16xf32>
    %c0_15 = arith.constant 0 : index
    %c0_16 = arith.constant 0 : index
    %17 = vector.load %arg7[%c0_15, %c0_16] : memref<1x16xf32, #tpu.memory_space<vmem>>, vector<1x16xf32>
    %18 = vector.broadcast %17 : vector<1x16xf32> to vector<16x16xf32>
    %19 = arith.addf %16, %18 : vector<16x16xf32>
    %20 = vector.shape_cast %19 : vector<16x16xf32> to vector<2x8x16xf32>
    %cst_17 = arith.constant dense<0.000000e+00> : vector<2x16xf32>
    %21 = vector.multi_reduction <add>, %20, %cst_17 [1] : vector<2x8x16xf32> to vector<2x16xf32>
    %c0_18 = arith.constant 0 : index
    %c0_19 = arith.constant 0 : index
    %22 = vector.load %arg8[%c0_18, %c0_19] : memref<16x64xf32, #tpu.memory_space<vmem>>, vector<16x64xf32>
    %cst_20 = arith.constant dense<0.000000e+00> : vector<2x64xf32>
    %23 = tpu.matmul %21, %22, %cst_20 {dimension_numbers = #tpu.dot_dimension_numbers<[1], [0], [0], [1], [0, 0, 1, 1], [], []>} : vector<2x16xf32>, vector<16x64xf32>, vector<2x64xf32> -> vector<2x64xf32>
    %c0_21 = arith.constant 0 : index
    %c0_22 = arith.constant 0 : index
    %24 = vector.load %arg9[%c0_21, %c0_22] : memref<1x64xf32, #tpu.memory_space<vmem>>, vector<1x64xf32>
    %25 = vector.broadcast %24 : vector<1x64xf32> to vector<2x64xf32>
    %26 = arith.addf %23, %25 : vector<2x64xf32>
    %cst_23 = arith.constant 0.000000e+00 : f32
    %27 = vector.broadcast %cst_23 : f32 to vector<2x64xf32>
    %28 = arith.maximumf %26, %27 : vector<2x64xf32>
    %c0_24 = arith.constant 0 : index
    %c0_25 = arith.constant 0 : index
    %29 = vector.load %arg10[%c0_24, %c0_25] : memref<64x64xf32, #tpu.memory_space<vmem>>, vector<64x64xf32>
    %cst_26 = arith.constant dense<0.000000e+00> : vector<2x64xf32>
    %30 = tpu.matmul %28, %29, %cst_26 {dimension_numbers = #tpu.dot_dimension_numbers<[1], [0], [0], [1], [0, 0, 1, 1], [], []>} : vector<2x64xf32>, vector<64x64xf32>, vector<2x64xf32> -> vector<2x64xf32>
    %c0_27 = arith.constant 0 : index
    %c0_28 = arith.constant 0 : index
    %31 = vector.load %arg11[%c0_27, %c0_28] : memref<1x64xf32, #tpu.memory_space<vmem>>, vector<1x64xf32>
    %32 = vector.broadcast %31 : vector<1x64xf32> to vector<2x64xf32>
    %33 = arith.addf %30, %32 : vector<2x64xf32>
    %cst_29 = arith.constant 0.000000e+00 : f32
    %34 = vector.broadcast %cst_29 : f32 to vector<2x64xf32>
    %35 = arith.maximumf %33, %34 : vector<2x64xf32>
    %c0_30 = arith.constant 0 : index
    %c0_31 = arith.constant 0 : index
    %36 = vector.load %arg12[%c0_30, %c0_31] : memref<64x8xf32, #tpu.memory_space<vmem>>, vector<64x8xf32>
    %cst_32 = arith.constant dense<0.000000e+00> : vector<2x8xf32>
    %37 = tpu.matmul %35, %36, %cst_32 {dimension_numbers = #tpu.dot_dimension_numbers<[1], [0], [0], [1], [0, 0, 1, 1], [], []>} : vector<2x64xf32>, vector<64x8xf32>, vector<2x8xf32> -> vector<2x8xf32>
    %c0_33 = arith.constant 0 : index
    %c0_34 = arith.constant 0 : index
    %38 = vector.load %arg13[%c0_33, %c0_34] : memref<1x8xf32, #tpu.memory_space<vmem>>, vector<1x8xf32>
    %39 = vector.broadcast %38 : vector<1x8xf32> to vector<2x8xf32>
    %40 = arith.addf %37, %39 : vector<2x8xf32>
    %c0_35 = arith.constant 0 : index
    %c0_36 = arith.constant 0 : index
    %41 = vector.load %arg14[%c0_35, %c0_36] : memref<2x8xf32, #tpu.memory_space<vmem>>, vector<2x8xf32>
    tpu.vector_store %arg14[%c0_35, %c0_36], %40 {strides = array<i32>} : memref<2x8xf32, #tpu.memory_space<vmem>>, vector<2x8xf32>,
    return
  }
  func.func @transform_0(%arg0: i32) -> (i32, i32) {
    %c0_i32 = arith.constant 0 : i32
    %c0_i32_0 = arith.constant 0 : i32
    return %arg0, %c0_i32 : i32, i32
  }
  func.func @transform_1(%arg0: i32) -> (i32, i32) {
    %c0_i32 = arith.constant 0 : i32
    %c0_i32_0 = arith.constant 0 : i32
    %c0_i32_1 = arith.constant 0 : i32
    return %c0_i32, %c0_i32_0 : i32, i32
  }
  func.func @transform_2(%arg0: i32) -> (i32, i32) {
    %c0_i32 = arith.constant 0 : i32
    %c0_i32_0 = arith.constant 0 : i32
    %c0_i32_1 = arith.constant 0 : i32
    return %c0_i32, %c0_i32_0 : i32, i32
  }
  func.func @transform_3(%arg0: i32) -> (i32, i32) {
    %c0_i32 = arith.constant 0 : i32
    %c0_i32_0 = arith.constant 0 : i32
    %c0_i32_1 = arith.constant 0 : i32
    return %c0_i32, %c0_i32_0 : i32, i32
  }
  func.func @transform_4(%arg0: i32) -> (i32, i32) {
    %c0_i32 = arith.constant 0 : i32
    %c0_i32_0 = arith.constant 0 : i32
    %c0_i32_1 = arith.constant 0 : i32
    return %c0_i32, %c0_i32_0 : i32, i32
  }
  func.func @transform_5(%arg0: i32) -> (i32, i32) {
    %c0_i32 = arith.constant 0 : i32
    %c0_i32_0 = arith.constant 0 : i32
    %c0_i32_1 = arith.constant 0 : i32
    return %c0_i32, %c0_i32_0 : i32, i32
  }
  func.func @transform_6(%arg0: i32) -> (i32, i32) {
    %c0_i32 = arith.constant 0 : i32
    %c0_i32_0 = arith.constant 0 : i32
    %c0_i32_1 = arith.constant 0 : i32
    return %c0_i32, %c0_i32_0 : i32, i32
  }
  func.func @transform_7(%arg0: i32) -> (i32, i32) {
    %c0_i32 = arith.constant 0 : i32
    %c0_i32_0 = arith.constant 0 : i32
    %c0_i32_1 = arith.constant 0 : i32
    return %c0_i32, %c0_i32_0 : i32, i32
  }
  func.func @transform_8(%arg0: i32) -> (i32, i32) {
    %c0_i32 = arith.constant 0 : i32
    %c0_i32_0 = arith.constant 0 : i32
    %c0_i32_1 = arith.constant 0 : i32
    return %c0_i32, %c0_i32_0 : i32, i32
  }
  func.func @transform_9(%arg0: i32) -> (i32, i32) {
    %c0_i32 = arith.constant 0 : i32
    %c0_i32_0 = arith.constant 0 : i32
    %c0_i32_1 = arith.constant 0 : i32
    return %c0_i32, %c0_i32_0 : i32, i32
  }
  func.func @transform_10(%arg0: i32) -> (i32, i32) {
    %c0_i32 = arith.constant 0 : i32
    %c0_i32_0 = arith.constant 0 : i32
    %c0_i32_1 = arith.constant 0 : i32
    return %c0_i32, %c0_i32_0 : i32, i32
  }
  func.func @transform_11(%arg0: i32) -> (i32, i32) {
    %c0_i32 = arith.constant 0 : i32
    %c0_i32_0 = arith.constant 0 : i32
    %c0_i32_1 = arith.constant 0 : i32
    return %c0_i32, %c0_i32_0 : i32, i32
  }
  func.func @transform_12(%arg0: i32) -> (i32, i32) {
    %c0_i32 = arith.constant 0 : i32
    %c0_i32_0 = arith.constant 0 : i32
    %c0_i32_1 = arith.constant 0 : i32
    return %c0_i32, %c0_i32_0 : i32, i32
  }
  func.func @transform_13(%arg0: i32) -> (i32, i32) {
    %c0_i32 = arith.constant 0 : i32
    %c0_i32_0 = arith.constant 0 : i32
    return %arg0, %c0_i32 : i32, i32
  }
}

</mosaic_0001>

<llo_original>
// kernel: tpu_custom_call.1
$region0: #{tpu_custom_call.1}
  #allocation0 [shape = 'u32[]', space=smem, size = 0x4, offset = 0x4, fixed_abs, tag = 'smem constant byte address 0x4 - core index']
  #allocation1 [shape = 'u32[144,128]{1,0:T(1,128)}', space=vmem, size = 0x12000, scoped, tag = 'internal scratch']
  %s0 = inlined_call_operand.vmem [shape: f32[16,4], index: 0, kind: input, shape index: {}]
  %s1 = inlined_call_operand.vmem [shape: f32[4,64], index: 1, kind: input, shape index: {}]
  %s2 = inlined_call_operand.vmem [shape: f32[1,64], index: 2, kind: input, shape index: {}]
  %s3 = inlined_call_operand.vmem [shape: f32[64,64], index: 3, kind: input, shape index: {}]
  %s4 = inlined_call_operand.vmem [shape: f32[1,64], index: 4, kind: input, shape index: {}]
  %s5 = inlined_call_operand.vmem [shape: f32[64,16], index: 5, kind: input, shape index: {}]
  %s6 = inlined_call_operand.vmem [shape: f32[1,16], index: 6, kind: input, shape index: {}]
  %s7 = inlined_call_operand.vmem [shape: f32[16,64], index: 7, kind: input, shape index: {}]
  %s8 = inlined_call_operand.vmem [shape: f32[1,64], index: 8, kind: input, shape index: {}]
  %s9 = inlined_call_operand.vmem [shape: f32[64,64], index: 9, kind: input, shape index: {}]
  %s10 = inlined_call_operand.vmem [shape: f32[1,64], index: 10, kind: input, shape index: {}]
  %s11 = inlined_call_operand.vmem [shape: f32[64,8], index: 11, kind: input, shape index: {}]
  %s12 = inlined_call_operand.vmem [shape: f32[1,8], index: 12, kind: input, shape index: {}]
  %s13 = inlined_call_operand.hbm [shape: f32[2,8], index: 13, kind: output, shape index: {}]
  %s14 = sld [smem:[#allocation0]]
  $region62: #{tpu_custom_call.1} parent=0
    _
  %s16 = ssub.s32 1, %s14
  %s17 = scalar_select 0, %s16, %s14
  $region1: #{tpu_custom_call.1} parent=0
    #allocation2 [shape = 'u8[1024]{0}', space=vmem, size = 0x400, scoped, tag = 'output window, operand 0, single buffered']
    #allocation3 [shape = 's32[1]{0}', space=sflag, size = 0x4, scoped, tag = 'scoped memory for tpu_custom_call.1']
    %18 = vsyncpa [#allocation3], 0
    // Predicated region
    $region2: #{tpu_custom_call.1} parent=1 // pred_check
      _
    $region3: #{tpu_custom_call.1} parent=1 // pred_check_branch
      %20 = sbr.rel (0) target = $region5
    $region4: #{tpu_custom_call.1} parent=1 // pred_region
      _
    $region5: #{tpu_custom_call.1} parent=1 // pred_fallthru
      _
    // Predicated region
    $region6: #{tpu_custom_call.1} parent=1 // pred_check
      _
    $region7: #{tpu_custom_call.1} parent=1 // pred_check_branch
      %22 = sbr.rel (0) target = $region9
    $region8: #{tpu_custom_call.1} parent=1 // pred_region
      _
    $region9: #{tpu_custom_call.1} parent=1 // pred_fallthru
      _
    // Predicated region
    $region10: #{tpu_custom_call.1} parent=1 // pred_check
      _
    $region11: #{tpu_custom_call.1} parent=1 // pred_check_branch
      %24 = sbr.rel (0) target = $region13
    $region12: #{tpu_custom_call.1} parent=1 // pred_region
      _
    $region13: #{tpu_custom_call.1} parent=1 // pred_fallthru
      _
    // Predicated region
    $region14: #{tpu_custom_call.1} parent=1 // pred_check
      _
    $region15: #{tpu_custom_call.1} parent=1 // pred_check_branch
      %26 = sbr.rel (0) target = $region17
    $region16: #{tpu_custom_call.1} parent=1 // pred_region
      _
    $region17: #{tpu_custom_call.1} parent=1 // pred_fallthru
      _
    // Predicated region
    $region18: #{tpu_custom_call.1} parent=1 // pred_check
      _
    $region19: #{tpu_custom_call.1} parent=1 // pred_check_branch
      %28 = sbr.rel (0) target = $region21
    $region20: #{tpu_custom_call.1} parent=1 // pred_region
      _
    $region21: #{tpu_custom_call.1} parent=1 // pred_fallthru
      _
    // Predicated region
    $region22: #{tpu_custom_call.1} parent=1 // pred_check
      _
    $region23: #{tpu_custom_call.1} parent=1 // pred_check_branch
      %30 = sbr.rel (0) target = $region25
    $region24: #{tpu_custom_call.1} parent=1 // pred_region
      _
    $region25: #{tpu_custom_call.1} parent=1 // pred_fallthru
      _
    // Predicated region
    $region26: #{tpu_custom_call.1} parent=1 // pred_check
      _
    $region27: #{tpu_custom_call.1} parent=1 // pred_check_branch
      %32 = sbr.rel (0) target = $region29
    $region28: #{tpu_custom_call.1} parent=1 // pred_region
      _
    $region29: #{tpu_custom_call.1} parent=1 // pred_fallthru
      _
    // Predicated region
    $region30: #{tpu_custom_call.1} parent=1 // pred_check
      _
    $region31: #{tpu_custom_call.1} parent=1 // pred_check_branch
      %34 = sbr.rel (0) target = $region33
    $region32: #{tpu_custom_call.1} parent=1 // pred_region
      _
    $region33: #{tpu_custom_call.1} parent=1 // pred_fallthru
      _
    // Predicated region
    $region34: #{tpu_custom_call.1} parent=1 // pred_check
      _
    $region35: #{tpu_custom_call.1} parent=1 // pred_check_branch
      %36 = sbr.rel (0) target = $region37
    $region36: #{tpu_custom_call.1} parent=1 // pred_region
      _
    $region37: #{tpu_custom_call.1} parent=1 // pred_fallthru
      _
    // Predicated region
    $region38: #{tpu_custom_call.1} parent=1 // pred_check
      _
    $region39: #{tpu_custom_call.1} parent=1 // pred_check_branch
      %38 = sbr.rel (0) target = $region41
    $region40: #{tpu_custom_call.1} parent=1 // pred_region
      _
    $region41: #{tpu_custom_call.1} parent=1 // pred_fallthru
      _
    // Predicated region
    $region42: #{tpu_custom_call.1} parent=1 // pred_check
      _
    $region43: #{tpu_custom_call.1} parent=1 // pred_check_branch
      %40 = sbr.rel (0) target = $region45
    $region44: #{tpu_custom_call.1} parent=1 // pred_region
      _
    $region45: #{tpu_custom_call.1} parent=1 // pred_fallthru
      _
    // Predicated region
    $region46: #{tpu_custom_call.1} parent=1 // pred_check
      _
    $region47: #{tpu_custom_call.1} parent=1 // pred_check_branch
      %42 = sbr.rel (0) target = $region49
    $region48: #{tpu_custom_call.1} parent=1 // pred_region
      _
    $region49: #{tpu_custom_call.1} parent=1 // pred_fallthru
      _
    // Predicated region
    $region50: #{tpu_custom_call.1} parent=1 // pred_check
      _
    $region51: #{tpu_custom_call.1} parent=1 // pred_check_branch
      %44 = sbr.rel (0) target = $region53
    $region52: #{tpu_custom_call.1} parent=1 // pred_region
      _
    $region53: #{tpu_custom_call.1} parent=1 // pred_fallthru
      _
    %v45 = vld [vmem:[%s0] sm:$0xff]
    %v46 = vld [vmem:[%s0 + $0x8] sm:$0xff]
    %v47 = vld [vmem:[%s1] sm:$0xf]
    %v48 = vld [vmem:[%s2] sm:$0x1]
    %v50 = vlaneseq
    %v51 = vshrl.u32 %v50, 7
    %v52 = vsub.s32 0, %v51
    %v53 = vrot.slane %v48, %v52
    %vm55 = vcmask 31744
    %v57 = vsel %vm55, %v45, 0
    %v60 = vsel %vm55, %v46, 0
    %vm62 = vcmask 1043456
    %v64 = vsel %vm62, %v47, 0
    %66 = vmatprep.subr.mxu0 0.0
    %67 = vmatpush1.msra.mxu0 0.0
    %68 = vmatprep.subr.mxu0 0.0
    %69 = vmatpush1.msra.mxu0 0.0
    %70 = vmatprep.subr.mxu0 0.0
    %71 = vmatpush1.msra.mxu0 0.0
    %72 = vmatprep.subr.mxu0 0.0
    %73 = vmatpush1.msra.mxu0 0.0
    %74 = vmatprep.subr.mxu0 0.0
    %75 = vmatpush1.msra.mxu0 0.0
    %76 = vmatprep.subr.mxu0 0.0
    %77 = vmatpush1.msra.mxu0 0.0
    %78 = vmatprep.subr.mxu0 0.0
    %79 = vmatpush1.msra.mxu0 0.0
    %80 = vmatprep.subr.mxu0 0.0
    %81 = vmatpush1.msra.mxu0 0.0
    %82 = vmatprep.subr.mxu0 0.0
    %83 = vmatpush1.msra.mxu0 0.0
    %84 = vmatprep.subr.mxu0 0.0
    %85 = vmatpush1.msra.mxu0 0.0
    %86 = vmatprep.subr.mxu0 0.0
    %87 = vmatpush1.msra.mxu0 0.0
    %88 = vmatprep.subr.mxu0 0.0
    %89 = vmatpush1.msra.mxu0 0.0
    %90 = vmatprep.subr.mxu0 0.0
    %91 = vmatpush1.msra.mxu0 0.0
    %92 = vmatprep.subr.mxu0 0.0
    %93 = vmatpush1.msra.mxu0 0.0
    %94 = vmatprep.subr.mxu0 0.0
    %95 = vmatpush1.msra.mxu0 0.0
    %96 = vmatprep.subr.mxu0 0.0
    %97 = vmatpush1.msra.mxu0 %v64
    %98 = vmatprep.subr.mxu0 0.0
    %99 = vmatpush2.msra.mxu0 0.0
    %100 = vmatprep.subr.mxu0 0.0
    %101 = vmatpush2.msra.mxu0 0.0
    %102 = vmatprep.subr.mxu0 0.0
    %103 = vmatpush2.msra.mxu0 0.0
    %104 = vmatprep.subr.mxu0 0.0
    %105 = vmatpush2.msra.mxu0 0.0
    %106 = vmatprep.subr.mxu0 0.0
    %107 = vmatpush2.msra.mxu0 0.0
    %108 = vmatprep.subr.mxu0 0.0
    %109 = vmatpush2.msra.mxu0 0.0
    %110 = vmatprep.subr.mxu0 0.0
    %111 = vmatpush2.msra.mxu0 0.0
    %112 = vmatprep.subr.mxu0 0.0
    %113 = vmatpush2.msra.mxu0 0.0
    %114 = vmatprep.subr.mxu0 0.0
    %115 = vmatpush2.msra.mxu0 0.0
    %116 = vmatprep.subr.mxu0 0.0
    %117 = vmatpush2.msra.mxu0 0.0
    %118 = vmatprep.subr.mxu0 0.0
    %119 = vmatpush2.msra.mxu0 0.0
    %120 = vmatprep.subr.mxu0 0.0
    %121 = vmatpush2.msra.mxu0 0.0
    %122 = vmatprep.subr.mxu0 0.0
    %123 = vmatpush2.msra.mxu0 0.0
    %124 = vmatprep.subr.mxu0 0.0
    %125 = vmatpush2.msra.mxu0 0.0
    %126 = vmatprep.subr.mxu0 0.0
    %127 = vmatpush2.msra.mxu0 0.0
    %128 = vmatprep.subr.mxu0 0.0
    %129 = vmatpush2.msra.mxu0 0.0
    %130 = vmatprep.mubr.f32.mxu0 0.0
    %131 = vmatmul.mubr.f32.gmra.mxu0 %v57
    %v132 = vpop.f32.mrf.mxu0
    %v133 = vadd.f32 %v53, %v132
    %v134 = vpop.f32.mrf.mxu0
    %135 = vmatprep.mubr.f32.mxu0 0.0
    %136 = vmatmul.mubr.f32.gmra.mxu0 %v60
    %v137 = vpop.f32.mrf.mxu0
    %v138 = vadd.f32 %v53, %v137
    %v139 = vpop.f32.mrf.mxu0
    %140 = vdwg.mxu0
    %v141 = vmax.f32 %v133, 0.0
    %v142 = vmax.f32 %v138, 0.0
    %v143 = vld [vmem:[%s3] sm:$0xff]
    %v144 = vld [vmem:[%s3 + $0x8] sm:$0xff]
    %v145 = vld [vmem:[%s3 + $0x10] sm:$0xff]
    %v146 = vld [vmem:[%s3 + $0x18] sm:$0xff]
    %v147 = vld [vmem:[%s3 + $0x20] sm:$0xff]
    %v148 = vld [vmem:[%s3 + $0x28] sm:$0xff]
    %v149 = vld [vmem:[%s3 + $0x30] sm:$0xff]
    %v150 = vld [vmem:[%s3 + $0x38] sm:$0xff]
    %v151 = vld [vmem:[%s4] sm:$0x1]
    %v153 = vlaneseq
    %v154 = vshrl.u32 %v153, 7
    %v155 = vsub.s32 0, %v154
    %v156 = vrot.slane %v151, %v155
    %vm158 = vcmask 523264
    %v160 = vsel %vm158, %v141, 0
    %v163 = vsel %vm158, %v142, 0
    %165 = vmatprep.subr.mxu0 0.0
    %166 = vmatpush1.msra.mxu0 0.0
    %167 = vmatprep.subr.mxu0 0.0
    %168 = vmatpush1.msra.mxu0 0.0
    %169 = vmatprep.subr.mxu0 0.0
    %170 = vmatpush1.msra.mxu0 0.0
    %171 = vmatprep.subr.mxu0 0.0
    %172 = vmatpush1.msra.mxu0 0.0
    %173 = vmatprep.subr.mxu0 0.0
    %174 = vmatpush1.msra.mxu0 0.0
    %175 = vmatprep.subr.mxu0 0.0
    %176 = vmatpush1.msra.mxu0 0.0
    %177 = vmatprep.subr.mxu0 0.0
    %178 = vmatpush1.msra.mxu0 0.0
    %179 = vmatprep.subr.mxu0 0.0
    %180 = vmatpush1.msra.mxu0 0.0
    %181 = vmatprep.subr.mxu0 0.0
    %182 = vmatpush1.msra.mxu0 %v150
    %183 = vmatprep.subr.mxu0 0.0
    %184 = vmatpush1.msra.mxu0 %v149
    %185 = vmatprep.subr.mxu0 0.0
    %186 = vmatpush1.msra.mxu0 %v148
    %187 = vmatprep.subr.mxu0 0.0
    %188 = vmatpush1.msra.mxu0 %v147
    %189 = vmatprep.subr.mxu0 0.0
    %190 = vmatpush1.msra.mxu0 %v146
    %191 = vmatprep.subr.mxu0 0.0
    %192 = vmatpush1.msra.mxu0 %v145
    %193 = vmatprep.subr.mxu0 0.0
    %194 = vmatpush1.msra.mxu0 %v144
    %195 = vmatprep.subr.mxu0 0.0
    %196 = vmatpush1.msra.mxu0 %v143
    %197 = vmatprep.subr.mxu0 0.0
    %198 = vmatpush2.msra.mxu0 0.0
    %199 = vmatprep.subr.mxu0 0.0
    %200 = vmatpush2.msra.mxu0 0.0
    %201 = vmatprep.subr.mxu0 0.0
    %202 = vmatpush2.msra.mxu0 0.0
    %203 = vmatprep.subr.mxu0 0.0
    %204 = vmatpush2.msra.mxu0 0.0
    %205 = vmatprep.subr.mxu0 0.0
    %206 = vmatpush2.msra.mxu0 0.0
    %207 = vmatprep.subr.mxu0 0.0
    %208 = vmatpush2.msra.mxu0 0.0
    %209 = vmatprep.subr.mxu0 0.0
    %210 = vmatpush2.msra.mxu0 0.0
    %211 = vmatprep.subr.mxu0 0.0
    %212 = vmatpush2.msra.mxu0 0.0
    %213 = vmatprep.subr.mxu0 0.0
    %214 = vmatpush2.msra.mxu0 0.0
    %215 = vmatprep.subr.mxu0 0.0
    %216 = vmatpush2.msra.mxu0 0.0
    %217 = vmatprep.subr.mxu0 0.0
    %218 = vmatpush2.msra.mxu0 0.0
    %219 = vmatprep.subr.mxu0 0.0
    %220 = vmatpush2.msra.mxu0 0.0
    %221 = vmatprep.subr.mxu0 0.0
    %222 = vmatpush2.msra.mxu0 0.0
    %223 = vmatprep.subr.mxu0 0.0
    %224 = vmatpush2.msra.mxu0 0.0
    %225 = vmatprep.subr.mxu0 0.0
    %226 = vmatpush2.msra.mxu0 0.0
    %227 = vmatprep.subr.mxu0 0.0
    %228 = vmatpush2.msra.mxu0 0.0
    %229 = vmatprep.mubr.f32.mxu0 0.0
    %230 = vmatmul.mubr.f32.gmra.mxu0 %v160
    %v231 = vpop.f32.mrf.mxu0
    %v232 = vadd.f32 %v156, %v231
    %v233 = vpop.f32.mrf.mxu0
    %234 = vmatprep.mubr.f32.mxu0 0.0
    %235 = vmatmul.mubr.f32.gmra.mxu0 %v163
    %v236 = vpop.f32.mrf.mxu0
    %v237 = vadd.f32 %v156, %v236
    %v238 = vpop.f32.mrf.mxu0
    %239 = vdwg.mxu0
    %v240 = vmax.f32 %v232, 0.0
    %v241 = vmax.f32 %v237, 0.0
    %v242 = vld [vmem:[%s5] sm:$0xff]
    %v243 = vld [vmem:[%s5 + $0x8] sm:$0xff]
    %v244 = vld [vmem:[%s5 + $0x10] sm:$0xff]
    %v245 = vld [vmem:[%s5 + $0x18] sm:$0xff]
    %v246 = vld [vmem:[%s5 + $0x20] sm:$0xff]
    %v247 = vld [vmem:[%s5 + $0x28] sm:$0xff]
    %v248 = vld [vmem:[%s5 + $0x30] sm:$0xff]
    %v249 = vld [vmem:[%s5 + $0x38] sm:$0xff]
    %v250 = vld [vmem:[%s6] sm:$0x1]
    %v252 = vlaneseq
    %v253 = vshrl.u32 %v252, 7
    %v254 = vsub.s32 0, %v253
    %v255 = vrot.slane %v250, %v254
    %v258 = vsel %vm158, %v240, 0
    %v261 = vsel %vm158, %v241, 0
    %263 = vmatprep.subr.mxu0 0.0
    %264 = vmatpush1.msra.mxu0 0.0
    %265 = vmatprep.subr.mxu0 0.0
    %266 = vmatpush1.msra.mxu0 0.0
    %267 = vmatprep.subr.mxu0 0.0
    %268 = vmatpush1.msra.mxu0 0.0
    %269 = vmatprep.subr.mxu0 0.0
    %270 = vmatpush1.msra.mxu0 0.0
    %271 = vmatprep.subr.mxu0 0.0
    %272 = vmatpush1.msra.mxu0 0.0
    %273 = vmatprep.subr.mxu0 0.0
    %274 = vmatpush1.msra.mxu0 0.0
    %275 = vmatprep.subr.mxu0 0.0
    %276 = vmatpush1.msra.mxu0 0.0
    %277 = vmatprep.subr.mxu0 0.0
    %278 = vmatpush1.msra.mxu0 0.0
    %279 = vmatprep.subr.mxu0 0.0
    %280 = vmatpush1.msra.mxu0 %v249
    %281 = vmatprep.subr.mxu0 0.0
    %282 = vmatpush1.msra.mxu0 %v248
    %283 = vmatprep.subr.mxu0 0.0
    %284 = vmatpush1.msra.mxu0 %v247
    %285 = vmatprep.subr.mxu0 0.0
    %286 = vmatpush1.msra.mxu0 %v246
    %287 = vmatprep.subr.mxu0 0.0
    %288 = vmatpush1.msra.mxu0 %v245
    %289 = vmatprep.subr.mxu0 0.0
    %290 = vmatpush1.msra.mxu0 %v244
    %291 = vmatprep.subr.mxu0 0.0
    %292 = vmatpush1.msra.mxu0 %v243
    %293 = vmatprep.subr.mxu0 0.0
    %294 = vmatpush1.msra.mxu0 %v242
    %295 = vmatprep.subr.mxu0 0.0
    %296 = vmatpush2.msra.mxu0 0.0
    %297 = vmatprep.subr.mxu0 0.0
    %298 = vmatpush2.msra.mxu0 0.0
    %299 = vmatprep.subr.mxu0 0.0
    %300 = vmatpush2.msra.mxu0 0.0
    %301 = vmatprep.subr.mxu0 0.0
    %302 = vmatpush2.msra.mxu0 0.0
    %303 = vmatprep.subr.mxu0 0.0
    %304 = vmatpush2.msra.mxu0 0.0
    %305 = vmatprep.subr.mxu0 0.0
    %306 = vmatpush2.msra.mxu0 0.0
    %307 = vmatprep.subr.mxu0 0.0
    %308 = vmatpush2.msra.mxu0 0.0
    %309 = vmatprep.subr.mxu0 0.0
    %310 = vmatpush2.msra.mxu0 0.0
    %311 = vmatprep.subr.mxu0 0.0
    %312 = vmatpush2.msra.mxu0 0.0
    %313 = vmatprep.subr.mxu0 0.0
    %314 = vmatpush2.msra.mxu0 0.0
    %315 = vmatprep.subr.mxu0 0.0
    %316 = vmatpush2.msra.mxu0 0.0
    %317 = vmatprep.subr.mxu0 0.0
    %318 = vmatpush2.msra.mxu0 0.0
    %319 = vmatprep.subr.mxu0 0.0
    %320 = vmatpush2.msra.mxu0 0.0
    %321 = vmatprep.subr.mxu0 0.0
    %322 = vmatpush2.msra.mxu0 0.0
    %323 = vmatprep.subr.mxu0 0.0
    %324 = vmatpush2.msra.mxu0 0.0
    %325 = vmatprep.subr.mxu0 0.0
    %326 = vmatpush2.msra.mxu0 0.0
    %327 = vmatprep.mubr.f32.mxu0 0.0
    %328 = vmatmul.mubr.f32.gmra.mxu0 %v258
    %v329 = vpop.f32.mrf.mxu0
    %v330 = vadd.f32 %v255, %v329
    %v331 = vpop.f32.mrf.mxu0
    %332 = vmatprep.mubr.f32.mxu0 0.0
    %333 = vmatmul.mubr.f32.gmra.mxu0 %v261
    %v334 = vpop.f32.mrf.mxu0
    %v335 = vadd.f32 %v255, %v334
    %v336 = vpop.f32.mrf.mxu0
    %337 = vdwg.mxu0
    %vm338 = vcmask 130048
    %v339 = vsel %vm338, %v330, 0.0
    %v340 = vrot.slane %v339, 4
    %v341 = vadd.f32 %v339, %v340
    %v342 = vrot.slane %v341, 2
    %v343 = vadd.f32 %v341, %v342
    %v344 = vrot.slane %v343, 1
    %v345 = vadd.f32 %v343, %v344
    %v346 = vsel %vm338, %v335, 0.0
    %v347 = vrot.slane %v346, 4
    %v348 = vadd.f32 %v346, %v347
    %v349 = vrot.slane %v348, 2
    %v350 = vadd.f32 %v348, %v349
    %v351 = vrot.slane %v350, 1
    %v352 = vadd.f32 %v350, %v351
    %v353 = vld [vmem:[%s7] sm:$0xff]
    %v354 = vld [vmem:[%s7 + $0x8] sm:$0xff]
    %v355 = vld [vmem:[%s8] sm:$0x1]
    %v357 = vlaneseq
    %v358 = vshrl.u32 %v357, 7
    %v359 = vsub.s32 0, %v358
    %v360 = vrot.slane %v355, %v359
    %vm364 = vcmask 1041409
    %v365 = vsel %vm364, %v352, %v345
    %v366 = vsel %vm338, %v365, 0
    %368 = vmatprep.subr.mxu0 0.0
    %369 = vmatpush1.msra.mxu0 0.0
    %370 = vmatprep.subr.mxu0 0.0
    %371 = vmatpush1.msra.mxu0 0.0
    %372 = vmatprep.subr.mxu0 0.0
    %373 = vmatpush1.msra.mxu0 0.0
    %374 = vmatprep.subr.mxu0 0.0
    %375 = vmatpush1.msra.mxu0 0.0
    %376 = vmatprep.subr.mxu0 0.0
    %377 = vmatpush1.msra.mxu0 0.0
    %378 = vmatprep.subr.mxu0 0.0
    %379 = vmatpush1.msra.mxu0 0.0
    %380 = vmatprep.subr.mxu0 0.0
    %381 = vmatpush1.msra.mxu0 0.0
    %382 = vmatprep.subr.mxu0 0.0
    %383 = vmatpush1.msra.mxu0 0.0
    %384 = vmatprep.subr.mxu0 0.0
    %385 = vmatpush1.msra.mxu0 0.0
    %386 = vmatprep.subr.mxu0 0.0
    %387 = vmatpush1.msra.mxu0 0.0
    %388 = vmatprep.subr.mxu0 0.0
    %389 = vmatpush1.msra.mxu0 0.0
    %390 = vmatprep.subr.mxu0 0.0
    %391 = vmatpush1.msra.mxu0 0.0
    %392 = vmatprep.subr.mxu0 0.0
    %393 = vmatpush1.msra.mxu0 0.0
    %394 = vmatprep.subr.mxu0 0.0
    %395 = vmatpush1.msra.mxu0 0.0
    %396 = vmatprep.subr.mxu0 0.0
    %397 = vmatpush1.msra.mxu0 %v354
    %398 = vmatprep.subr.mxu0 0.0
    %399 = vmatpush1.msra.mxu0 %v353
    %400 = vmatprep.subr.mxu0 0.0
    %401 = vmatpush2.msra.mxu0 0.0
    %402 = vmatprep.subr.mxu0 0.0
    %403 = vmatpush2.msra.mxu0 0.0
    %404 = vmatprep.subr.mxu0 0.0
    %405 = vmatpush2.msra.mxu0 0.0
    %406 = vmatprep.subr.mxu0 0.0
    %407 = vmatpush2.msra.mxu0 0.0
    %408 = vmatprep.subr.mxu0 0.0
    %409 = vmatpush2.msra.mxu0 0.0
    %410 = vmatprep.subr.mxu0 0.0
    %411 = vmatpush2.msra.mxu0 0.0
    %412 = vmatprep.subr.mxu0 0.0
    %413 = vmatpush2.msra.mxu0 0.0
    %414 = vmatprep.subr.mxu0 0.0
    %415 = vmatpush2.msra.mxu0 0.0
    %416 = vmatprep.subr.mxu0 0.0
    %417 = vmatpush2.msra.mxu0 0.0
    %418 = vmatprep.subr.mxu0 0.0
    %419 = vmatpush2.msra.mxu0 0.0
    %420 = vmatprep.subr.mxu0 0.0
    %421 = vmatpush2.msra.mxu0 0.0
    %422 = vmatprep.subr.mxu0 0.0
    %423 = vmatpush2.msra.mxu0 0.0
    %424 = vmatprep.subr.mxu0 0.0
    %425 = vmatpush2.msra.mxu0 0.0
    %426 = vmatprep.subr.mxu0 0.0
    %427 = vmatpush2.msra.mxu0 0.0
    %428 = vmatprep.subr.mxu0 0.0
    %429 = vmatpush2.msra.mxu0 0.0
    %430 = vmatprep.subr.mxu0 0.0
    %431 = vmatpush2.msra.mxu0 0.0
    %432 = vmatprep.mubr.f32.mxu0 0.0
    %433 = vmatmul.mubr.f32.gmra.mxu0 %v366
    %v434 = vpop.f32.mrf.mxu0
    %v435 = vadd.f32 %v360, %v434
    %v436 = vpop.f32.mrf.mxu0
    %437 = vdwg.mxu0
    %v438 = vmax.f32 %v435, 0.0
    %v439 = vld [vmem:[%s9] sm:$0xff]
    %v440 = vld [vmem:[%s9 + $0x8] sm:$0xff]
    %v441 = vld [vmem:[%s9 + $0x10] sm:$0xff]
    %v442 = vld [vmem:[%s9 + $0x18] sm:$0xff]
    %v443 = vld [vmem:[%s9 + $0x20] sm:$0xff]
    %v444 = vld [vmem:[%s9 + $0x28] sm:$0xff]
    %v445 = vld [vmem:[%s9 + $0x30] sm:$0xff]
    %v446 = vld [vmem:[%s9 + $0x38] sm:$0xff]
    %v447 = vld [vmem:[%s10] sm:$0x1]
    %v449 = vlaneseq
    %v450 = vshrl.u32 %v449, 7
    %v451 = vsub.s32 0, %v450
    %v452 = vrot.slane %v447, %v451
    %v455 = vsel %vm158, %v438, 0
    %457 = vmatprep.subr.mxu0 0.0
    %458 = vmatpush1.msra.mxu0 0.0
    %459 = vmatprep.subr.mxu0 0.0
    %460 = vmatpush1.msra.mxu0 0.0
    %461 = vmatprep.subr.mxu0 0.0
    %462 = vmatpush1.msra.mxu0 0.0
    %463 = vmatprep.subr.mxu0 0.0
    %464 = vmatpush1.msra.mxu0 0.0
    %465 = vmatprep.subr.mxu0 0.0
    %466 = vmatpush1.msra.mxu0 0.0
    %467 = vmatprep.subr.mxu0 0.0
    %468 = vmatpush1.msra.mxu0 0.0
    %469 = vmatprep.subr.mxu0 0.0
    %470 = vmatpush1.msra.mxu0 0.0
    %471 = vmatprep.subr.mxu0 0.0
    %472 = vmatpush1.msra.mxu0 0.0
    %473 = vmatprep.subr.mxu0 0.0
    %474 = vmatpush1.msra.mxu0 %v446
    %475 = vmatprep.subr.mxu0 0.0
    %476 = vmatpush1.msra.mxu0 %v445
    %477 = vmatprep.subr.mxu0 0.0
    %478 = vmatpush1.msra.mxu0 %v444
    %479 = vmatprep.subr.mxu0 0.0
    %480 = vmatpush1.msra.mxu0 %v443
    %481 = vmatprep.subr.mxu0 0.0
    %482 = vmatpush1.msra.mxu0 %v442
    %483 = vmatprep.subr.mxu0 0.0
    %484 = vmatpush1.msra.mxu0 %v441
    %485 = vmatprep.subr.mxu0 0.0
    %486 = vmatpush1.msra.mxu0 %v440
    %487 = vmatprep.subr.mxu0 0.0
    %488 = vmatpush1.msra.mxu0 %v439
    %489 = vmatprep.subr.mxu0 0.0
    %490 = vmatpush2.msra.mxu0 0.0
    %491 = vmatprep.subr.mxu0 0.0
    %492 = vmatpush2.msra.mxu0 0.0
    %493 = vmatprep.subr.mxu0 0.0
    %494 = vmatpush2.msra.mxu0 0.0
    %495 = vmatprep.subr.mxu0 0.0
    %496 = vmatpush2.msra.mxu0 0.0
    %497 = vmatprep.subr.mxu0 0.0
    %498 = vmatpush2.msra.mxu0 0.0
    %499 = vmatprep.subr.mxu0 0.0
    %500 = vmatpush2.msra.mxu0 0.0
    %501 = vmatprep.subr.mxu0 0.0
    %502 = vmatpush2.msra.mxu0 0.0
    %503 = vmatprep.subr.mxu0 0.0
    %504 = vmatpush2.msra.mxu0 0.0
    %505 = vmatprep.subr.mxu0 0.0
    %506 = vmatpush2.msra.mxu0 0.0
    %507 = vmatprep.subr.mxu0 0.0
    %508 = vmatpush2.msra.mxu0 0.0
    %509 = vmatprep.subr.mxu0 0.0
    %510 = vmatpush2.msra.mxu0 0.0
    %511 = vmatprep.subr.mxu0 0.0
    %512 = vmatpush2.msra.mxu0 0.0
    %513 = vmatprep.subr.mxu0 0.0
    %514 = vmatpush2.msra.mxu0 0.0
    %515 = vmatprep.subr.mxu0 0.0
    %516 = vmatpush2.msra.mxu0 0.0
    %517 = vmatprep.subr.mxu0 0.0
    %518 = vmatpush2.msra.mxu0 0.0
    %519 = vmatprep.subr.mxu0 0.0
    %520 = vmatpush2.msra.mxu0 0.0
    %521 = vmatprep.mubr.f32.mxu0 0.0
    %522 = vmatmul.mubr.f32.gmra.mxu0 %v455
    %v523 = vpop.f32.mrf.mxu0
    %v524 = vadd.f32 %v452, %v523
    %v525 = vpop.f32.mrf.mxu0
    %526 = vdwg.mxu0
    %v527 = vmax.f32 %v524, 0.0
    %v528 = vld [vmem:[%s11] sm:$0xff]
    %v529 = vld [vmem:[%s11 + $0x8] sm:$0xff]
    %v530 = vld [vmem:[%s11 + $0x10] sm:$0xff]
    %v531 = vld [vmem:[%s11 + $0x18] sm:$0xff]
    %v532 = vld [vmem:[%s11 + $0x20] sm:$0xff]
    %v533 = vld [vmem:[%s11 + $0x28] sm:$0xff]
    %v534 = vld [vmem:[%s11 + $0x30] sm:$0xff]
    %v535 = vld [vmem:[%s11 + $0x38] sm:$0xff]
    %v536 = vld [vmem:[%s12] sm:$0x1]
    %v538 = vlaneseq
    %v539 = vshrl.u32 %v538, 7
    %v540 = vsub.s32 0, %v539
    %v541 = vrot.slane %v536, %v540
    %v544 = vsel %vm158, %v527, 0
    %546 = vmatprep.subr.mxu0 0.0
    %547 = vmatpush1.msra.mxu0 0.0
    %548 = vmatprep.subr.mxu0 0.0
    %549 = vmatpush1.msra.mxu0 0.0
    %550 = vmatprep.subr.mxu0 0.0
    %551 = vmatpush1.msra.mxu0 0.0
    %552 = vmatprep.subr.mxu0 0.0
    %553 = vmatpush1.msra.mxu0 0.0
    %554 = vmatprep.subr.mxu0 0.0
    %555 = vmatpush1.msra.mxu0 0.0
    %556 = vmatprep.subr.mxu0 0.0
    %557 = vmatpush1.msra.mxu0 0.0
    %558 = vmatprep.subr.mxu0 0.0
    %559 = vmatpush1.msra.mxu0 0.0
    %560 = vmatprep.subr.mxu0 0.0
    %561 = vmatpush1.msra.mxu0 0.0
    %562 = vmatprep.subr.mxu0 0.0
    %563 = vmatpush1.msra.mxu0 %v535
    %564 = vmatprep.subr.mxu0 0.0
    %565 = vmatpush1.msra.mxu0 %v534
    %566 = vmatprep.subr.mxu0 0.0
    %567 = vmatpush1.msra.mxu0 %v533
    %568 = vmatprep.subr.mxu0 0.0
    %569 = vmatpush1.msra.mxu0 %v532
    %570 = vmatprep.subr.mxu0 0.0
    %571 = vmatpush1.msra.mxu0 %v531
    %572 = vmatprep.subr.mxu0 0.0
    %573 = vmatpush1.msra.mxu0 %v530
    %574 = vmatprep.subr.mxu0 0.0
    %575 = vmatpush1.msra.mxu0 %v529
    %576 = vmatprep.subr.mxu0 0.0
    %577 = vmatpush1.msra.mxu0 %v528
    %578 = vmatprep.subr.mxu0 0.0
    %579 = vmatpush2.msra.mxu0 0.0
    %580 = vmatprep.subr.mxu0 0.0
    %581 = vmatpush2.msra.mxu0 0.0
    %582 = vmatprep.subr.mxu0 0.0
    %583 = vmatpush2.msra.mxu0 0.0
    %584 = vmatprep.subr.mxu0 0.0
    %585 = vmatpush2.msra.mxu0 0.0
    %586 = vmatprep.subr.mxu0 0.0
    %587 = vmatpush2.msra.mxu0 0.0
    %588 = vmatprep.subr.mxu0 0.0
    %589 = vmatpush2.msra.mxu0 0.0
    %590 = vmatprep.subr.mxu0 0.0
    %591 = vmatpush2.msra.mxu0 0.0
    %592 = vmatprep.subr.mxu0 0.0
    %593 = vmatpush2.msra.mxu0 0.0
    %594 = vmatprep.subr.mxu0 0.0
    %595 = vmatpush2.msra.mxu0 0.0
    %596 = vmatprep.subr.mxu0 0.0
    %597 = vmatpush2.msra.mxu0 0.0
    %598 = vmatprep.subr.mxu0 0.0
    %599 = vmatpush2.msra.mxu0 0.0
    %600 = vmatprep.subr.mxu0 0.0
    %601 = vmatpush2.msra.mxu0 0.0
    %602 = vmatprep.subr.mxu0 0.0
    %603 = vmatpush2.msra.mxu0 0.0
    %604 = vmatprep.subr.mxu0 0.0
    %605 = vmatpush2.msra.mxu0 0.0
    %606 = vmatprep.subr.mxu0 0.0
    %607 = vmatpush2.msra.mxu0 0.0
    %608 = vmatprep.subr.mxu0 0.0
    %609 = vmatpush2.msra.mxu0 0.0
    %610 = vmatprep.mubr.f32.mxu0 0.0
    %611 = vmatmul.mubr.f32.gmra.mxu0 %v544
    %v612 = vpop.f32.mrf.mxu0
    %v613 = vadd.f32 %v541, %v612
    %v614 = vpop.f32.mrf.mxu0
    %615 = vdwg.mxu0
    %vm616 = vcmask 58368
    %617 = vst.msk [vmem:[#allocation2] sm:$0x3] %vm616, %v613
    // Predicated region
    $region54: #{tpu_custom_call.1} parent=1 // pred_check
      _
    $region55: #{tpu_custom_call.1} parent=1 // pred_check_branch
      %619 = sbr.rel (0) target = $region57
    $region56: #{tpu_custom_call.1} parent=1 // pred_region
      %s621 = ssub.s32 32, 32
      %622 = vsyncadd [#allocation3], %s621
      %s624 = sshll.u32 [#allocation2], 4
      %s625 = int_to_ptr.vmem [resolvable:$true] %s624
      %627 = dma.vmem_to_hbm [thread:$0]  %s625, 32, %s13, [#allocation3]
    $region57: #{tpu_custom_call.1} parent=1 // pred_fallthru
      _
    // Predicated region
    $region58: #{tpu_custom_call.1} parent=1 // pred_check
      _
    $region59: #{tpu_custom_call.1} parent=1 // pred_check_branch
      %629 = sbr.rel (0) target = $region61
    $region60: #{tpu_custom_call.1} parent=1 // pred_region
      %630 = dma.done [#allocation3], 32
    $region61: #{tpu_custom_call.1} parent=1 // pred_fallthru
      _
    %631 = vsyncpa [#allocation3], 1

</llo_original>
